<compile_context>
chip_gen: v6e
topology: v6e:2x2x1
jax: 0.10.0
libtpu: 0.0.40
codegen_flags: <defaults>
</compile_context>

<pallas_src>
import functools

import jax
import jax.numpy as jnp
from jax.experimental import pallas as pl
from jax.experimental.pallas import tpu as pltpu

V_TH = 1.0                         # If2 default threshold
_LANES = 128
_SUBLANES = 8
_SLAB = _SUBLANES * _LANES         # 1024 f32 elements per slab row (one vreg)
_VMEM_LIMIT = 32 * 1024 * 1024     # scoped VMEM budget, safe on v5e/v6e/v7x

# Row-tile caps (each row = 4 KiB of f32), chosen so double-buffered streams
# stay inside the 32 MiB scoped budget:
#   forward: 2 streams * 2 bufs * 4 MiB = 16 MiB
#   step:    4 streams * 2 bufs * 2 MiB = 16 MiB
#   scan:    3 streams * 2 bufs * 2 MiB + 2 MiB scratch = 14 MiB
_FWD_ROW_CAP = 1024
_STEP_ROW_CAP = 512
_SCAN_ROW_CAP = 512


# ----------------------------- kernels --------------------------------------

def _if2_spike_kernel(x_ref, spike_ref, *, v_th):
    # Fresh membrane (zeros, bias=None): membrane = x; spike = (membrane >= V_th).
    spike_ref[...] = (x_ref[...] >= v_th).astype(spike_ref.dtype)


def _if2_step_kernel(x_ref, mem_ref, spike_ref, mem_out_ref, *, v_th):
    # General IF step with explicit membrane carry (all f32 on the VPU).
    v = mem_ref[...] + x_ref[...]
    spike = (v >= v_th).astype(jnp.float32)
    spike_ref[...] = spike.astype(spike_ref.dtype)
    mem_out_ref[...] = v - spike * v_th


def _if2_scan_kernel(x_ref, spike_ref, mem_out_ref, mem_sc, *, v_th):
    # T fused IF steps; membrane lives in VMEM scratch across the T grid axis.
    t = pl.program_id(1)

    @pl.when(t == 0)
    def _():
        mem_sc[...] = jnp.zeros_like(mem_sc)

    v = mem_sc[...] + x_ref[0]
    spike = (v >= v_th).astype(jnp.float32)
    spike_ref[0] = spike.astype(spike_ref.dtype)
    mem_sc[...] = v - spike * v_th

    @pl.when(t == pl.num_programs(1) - 1)
    def _():
        mem_out_ref[...] = mem_sc[...]


# --------------------------- layout helpers ----------------------------------

def _round_up(x, m):
    return ((x + m - 1) // m) * m


def _pick_row_tile(rows, cap):
    """Sublane-aligned row tile; keeps >=2 grid steps when rows allow it."""
    if rows <= _SUBLANES:
        return rows                     # single tiny (full-array) block
    return max(_SUBLANES, min(cap, _round_up((rows + 1) // 2, _SUBLANES)))


def _to_slab(x):
    """Flatten to a lane-dense (rows, 1024) f32 slab.

    Common path (size % 1024 == 0) is a pure reshape (no extra HBM pass);
    ragged sizes fall back to one jnp.pad pass.
    """
    n = x.size
    rows = -(-n // _SLAB)
    flat = x.reshape(-1).astype(jnp.float32)
    pad = rows * _SLAB - n
    if pad:
        flat = jnp.pad(flat, (0, pad))
    return flat.reshape(rows, _SLAB), n


def _from_slab(y2d, n, shape):
    if y2d.size == n:
        return y2d.reshape(shape)
    return y2d.reshape(-1)[:n].reshape(shape)


def _to_slab_steps(xs):
    """(T, *spatial) -> (T, rows, 1024) slab; per-step flatten."""
    t = xs.shape[0]
    n = xs.size // t
    rows = -(-n // _SLAB)
    flat = xs.reshape(t, -1).astype(jnp.float32)
    pad = rows * _SLAB - n
    if pad:
        flat = jnp.pad(flat, ((0, 0), (0, pad)))
    return flat.reshape(t, rows, _SLAB), n


def _from_slab_steps(y3d, n, step_shape):
    t = y3d.shape[0]
    if y3d.shape[1] * y3d.shape[2] == n:
        return y3d.reshape((t,) + step_shape)
    return y3d.reshape(t, -1)[:, :n].reshape((t,) + step_shape)


# ----------------------------- entry points ----------------------------------

@functools.partial(jax.jit, static_argnames=("v_th", "spike_dtype"))
def if2_forward(x, v_th=V_TH, spike_dtype=jnp.float32):
    """Forward of a freshly-initialized If2 module: spike = (x >= V_th).float()."""
    shape = x.shape
    x2d, n = _to_slab(x)
    rows = x2d.shape[0]
    rt = _pick_row_tile(rows, _FWD_ROW_CAP)
    grid = (pl.cdiv(rows, rt),)

    kernel = functools.partial(_if2_spike_kernel, v_th=float(v_th))
    out = pl.pallas_call(
        kernel,
        out_shape=jax.ShapeDtypeStruct((rows, _SLAB), spike_dtype),
        grid_spec=pltpu.PrefetchScalarGridSpec(
            num_scalar_prefetch=0,
            grid=grid,
            in_specs=[pl.BlockSpec((rt, _SLAB), lambda i: (i, 0))],
            out_specs=pl.BlockSpec((rt, _SLAB), lambda i: (i, 0)),
        ),
        compiler_params=pltpu.CompilerParams(
            dimension_semantics=("parallel",),
            vmem_limit_bytes=_VMEM_LIMIT,
        ),
        cost_estimate=pl.CostEstimate(
            flops=n, transcendentals=0,
            bytes_accessed=n * (4 + jnp.dtype(spike_dtype).itemsize)),
    )(x2d)
    return _from_slab(out, n, shape)


@functools.partial(jax.jit, static_argnames=("v_th", "spike_dtype"))
def if2_step(x, membrane, v_th=V_TH, spike_dtype=jnp.float32):
    """General single IF step: returns (spike, new_membrane)."""
    shape = x.shape
    x2d, n = _to_slab(x)
    m2d, _ = _to_slab(membrane)
    rows = x2d.shape[0]
    rt = _pick_row_tile(rows, _STEP_ROW_CAP)
    grid = (pl.cdiv(rows, rt),)

    kernel = functools.partial(_if2_step_kernel, v_th=float(v_th))
    spike2d, mem2d = pl.pallas_call(
        kernel,
        out_shape=(jax.ShapeDtypeStruct((rows, _SLAB), spike_dtype),
                   jax.ShapeDtypeStruct((rows, _SLAB), jnp.float32)),
        grid_spec=pltpu.PrefetchScalarGridSpec(
            num_scalar_prefetch=0,
            grid=grid,
            in_specs=[pl.BlockSpec((rt, _SLAB), lambda i: (i, 0)),
                      pl.BlockSpec((rt, _SLAB), lambda i: (i, 0))],
            out_specs=[pl.BlockSpec((rt, _SLAB), lambda i: (i, 0)),
                       pl.BlockSpec((rt, _SLAB), lambda i: (i, 0))],
        ),
        compiler_params=pltpu.CompilerParams(
            dimension_semantics=("parallel",),
            vmem_limit_bytes=_VMEM_LIMIT,
        ),
        cost_estimate=pl.CostEstimate(
            flops=3 * n, transcendentals=0,
            bytes_accessed=n * (12 + jnp.dtype(spike_dtype).itemsize)),
        input_output_aliases={1: 1},   # update the membrane state in place
    )(x2d, m2d)
    return _from_slab(spike2d, n, shape), _from_slab(mem2d, n, shape)


@functools.partial(jax.jit, static_argnames=("v_th", "spike_dtype"))
def if2_scan(xs, v_th=V_TH, spike_dtype=jnp.float32):
    """T fused IF steps starting from a zero membrane, membrane held in VMEM.

    xs: (T, *spatial) -> (spikes: (T, *spatial), final_membrane: (*spatial,))
    """
    t_steps = xs.shape[0]
    step_shape = xs.shape[1:]
    x3d, n = _to_slab_steps(xs)
    rows = x3d.shape[1]
    rt = _pick_row_tile(rows, _SCAN_ROW_CAP)
    grid = (pl.cdiv(rows, rt), t_steps)   # carry (T) axis last

    kernel = functools.partial(_if2_scan_kernel, v_th=float(v_th))
    spikes3d, memf2d = pl.pallas_call(
        kernel,
        out_shape=(jax.ShapeDtypeStruct((t_steps, rows, _SLAB), spike_dtype),
                   jax.ShapeDtypeStruct((rows, _SLAB), jnp.float32)),
        grid_spec=pltpu.PrefetchScalarGridSpec(
            num_scalar_prefetch=0,
            grid=grid,
            in_specs=[pl.BlockSpec((1, rt, _SLAB), lambda i, t: (t, i, 0))],
            out_specs=[pl.BlockSpec((1, rt, _SLAB), lambda i, t: (t, i, 0)),
                       pl.BlockSpec((rt, _SLAB), lambda i, t: (i, 0))],
            scratch_shapes=[pltpu.VMEM((rt, _SLAB), jnp.float32)],
        ),
        compiler_params=pltpu.CompilerParams(
            dimension_semantics=("parallel", "arbitrary"),
            vmem_limit_bytes=_VMEM_LIMIT,
        ),
        cost_estimate=pl.CostEstimate(
            flops=3 * n * t_steps, transcendentals=0,
            bytes_accessed=n * t_steps * (4 + jnp.dtype(spike_dtype).itemsize)
                           + 4 * n),
    )(x3d)
    spikes = _from_slab_steps(spikes3d, n, step_shape)
    mem_final = _from_slab(memf2d, n, step_shape)
    return spikes, mem_final


# ------------------------------ references -----------------------------------

def _ref_fresh(x, v_th):
    return (x >= v_th).astype(jnp.float32)


def _ref_step(x, membrane, v_th):
    v = membrane + x
    s = (v >= v_th).astype(jnp.float32)
    return s, v - s * v_th


def _ref_scan(xs, v_th):
    def step(m, xt):
        v = m + xt
        s = (v >= v_th).astype(jnp.float32)
        return v - s * v_th, s
    m_t, spikes = jax.lax.scan(step, jnp.zeros(xs.shape[1:], jnp.float32), xs)
    return spikes, m_t


# --------------------------------- main ---------------------------------------

if __name__ == "__main__":
    key = jax.random.PRNGKey(0)
    k1, k2, k3 = jax.random.split(key, 3)
    B, C, H, W = 2, 4, 16, 16
    x = jax.random.normal(k1, (B, C, H, W), jnp.float32) * 2.0

    # Forward of a freshly-initialized If2 module (membrane starts at zero).
    spike = jax.block_until_ready(if2_forward(x))
    assert spike.shape == x.shape and spike.dtype == jnp.float32
    assert jnp.array_equal(spike, _ref_fresh(x, V_TH)), "fresh-forward mismatch"

    # General stateful step (explicit membrane carry) — validates the update rule.
    m0 = jax.random.normal(k2, (B, C, H, W), jnp.float32)
    spike2, m1 = jax.block_until_ready(if2_step(x, m0))
    ref_s, ref_m = _ref_step(x, m0, V_TH)
    assert jnp.array_equal(spike2, ref_s), "step spike mismatch"
    assert jnp.allclose(m1, ref_m, atol=1e-6), "step membrane mismatch"

    # Fused multi-timestep scan (membrane resident in VMEM across T).
    T = 4
    xs = jax.random.normal(k3, (T, B, C, H, W), jnp.float32) * 2.0
    spikes, m_t = jax.block_until_ready(if2_scan(xs))
    ref_ss, ref_mt = _ref_scan(xs, V_TH)
    assert spikes.shape == xs.shape and m_t.shape == xs.shape[1:]
    assert jnp.array_equal(spikes, ref_ss), "scan spike mismatch"
    assert jnp.allclose(m_t, ref_mt, atol=1e-6), "scan membrane mismatch"

    print("KERNEL_OK")
</pallas_src>

<mosaic_0001>
module attributes {stable_mosaic.version = 11 : i64} {
  func.func @_if2_spike_kernel(%arg0: i32, %arg1: memref<2x1024xf32, #tpu.memory_space<vmem>>, %arg2: memref<2x1024xf32, #tpu.memory_space<vmem>>) attributes {dimension_semantics = [#tpu.dimension_semantics<parallel>], iteration_bounds = array<i64: 1>, scalar_prefetch = 0 : i64, scratch_operands = 0 : i64, tpu.core_type = #tpu.core_type<tc>, window_params = [{transform_indices = @transform_0, window_bounds = array<i64: 2, 1024>}, {transform_indices = @transform_1, window_bounds = array<i64: 2, 1024>}]} {
    %c0 = arith.constant 0 : index
    %c0_0 = arith.constant 0 : index
    %0 = vector.load %arg1[%c0, %c0_0] : memref<2x1024xf32, #tpu.memory_space<vmem>>, vector<2x1024xf32>
    %cst = arith.constant 1.000000e+00 : f32
    %1 = vector.broadcast %cst : f32 to vector<2x1024xf32>
    %2 = arith.cmpf oge, %0, %1 : vector<2x1024xf32>
    %3 = arith.extui %2 : vector<2x1024xi1> to vector<2x1024xi32>
    %4 = arith.sitofp %3 : vector<2x1024xi32> to vector<2x1024xf32>
    %c0_1 = arith.constant 0 : index
    %c0_2 = arith.constant 0 : index
    %5 = vector.load %arg2[%c0_1, %c0_2] : memref<2x1024xf32, #tpu.memory_space<vmem>>, vector<2x1024xf32>
    tpu.vector_store %arg2[%c0_1, %c0_2], %4 {strides = array<i32>} : memref<2x1024xf32, #tpu.memory_space<vmem>>, vector<2x1024xf32>,
    return
  }
  func.func @transform_0(%arg0: i32) -> (i32, i32) {
    %c0_i32 = arith.constant 0 : i32
    %c0_i32_0 = arith.constant 0 : i32
    return %arg0, %c0_i32 : i32, i32
  }
  func.func @transform_1(%arg0: i32) -> (i32, i32) {
    %c0_i32 = arith.constant 0 : i32
    %c0_i32_0 = arith.constant 0 : i32
    return %arg0, %c0_i32 : i32, i32
  }
}

</mosaic_0001>

<llo_original>
// kernel: if2_forward.1
$region0: #{if2_forward.1}
  #allocation0 [shape = 'u32[]', space=smem, size = 0x4, offset = 0x4, fixed_abs, tag = 'smem constant byte address 0x4 - core index']
  #allocation1 [shape = 'u32[144,128]{1,0:T(1,128)}', space=vmem, size = 0x12000, scoped, tag = 'internal scratch']
  %s0 = inlined_call_operand.vmem [shape: f32[2,1024], index: 0, kind: input, shape index: {}]
  %s1 = inlined_call_operand.vmem [shape: f32[2,1024], index: 1, kind: output, shape index: {}]
  %s2 = sld [smem:[#allocation0]]
  $region14: #{if2_forward.1} parent=0
    _
  %s4 = ssub.s32 1, %s2
  %s5 = scalar_select 0, %s4, %s2
  // Predicated region
  $region2: #{if2_forward.1} parent=0 // pred_check
    _
  $region3: #{if2_forward.1} parent=0 // pred_check_branch
    %7 = sbr.rel (0) target = $region5
  $region4: #{if2_forward.1} parent=0 // pred_region
    _
  $region5: #{if2_forward.1} parent=0 // pred_fallthru
    _
  %v8 = vld [vmem:[%s0] sm:$0xff]
  %v9 = vld [vmem:[%s0 + $0x8] sm:$0xff]
  %vm10 = vcmp.ge.f32.partialorder %v8, 1.0
  %vm11 = vcmp.ge.f32.partialorder %v9, 1.0
  %v12 = vsel %vm10, 1, 0
  %v13 = vsel %vm11, 1, 0
  %v14 = vcvt.s32.f32 %v12
  %v15 = vcvt.s32.f32 %v13
  %16 = vst [vmem:[%s1] sm:$0xff] %v14
  %17 = vst [vmem:[%s1 + $0x8] sm:$0xff] %v15
  // Predicated region
  $region6: #{if2_forward.1} parent=0 // pred_check
    _
  $region7: #{if2_forward.1} parent=0 // pred_check_branch
    %19 = sbr.rel (0) target = $region9
  $region8: #{if2_forward.1} parent=0 // pred_region
    _
  $region9: #{if2_forward.1} parent=0 // pred_fallthru
    _
  // Predicated region
  $region10: #{if2_forward.1} parent=0 // pred_check
    _
  $region11: #{if2_forward.1} parent=0 // pred_check_branch
    %21 = sbr.rel (0) target = $region13
  $region12: #{if2_forward.1} parent=0 // pred_region
    _
  $region13: #{if2_forward.1} parent=0 // pred_fallthru
    _

</llo_original>
